<compile_context>
chip_gen: v5e
topology: v5e:2x2
jax: 0.10.0
libtpu: 0.0.40
codegen_flags: <defaults>
</compile_context>

<pallas_src>
import jax
import jax.numpy as jnp
from jax import lax
from jax.experimental import pallas as pl
from jax.experimental.pallas import tpu as pltpu


def _round_up(x, m):
    return ((x + m - 1) // m) * m


# ---------------------------------------------------------------------------
# Stage 1: per-entity aspect reduction (H-sum * importance + offset) * scale.
# ---------------------------------------------------------------------------
def _asp_reduce_kernel(rep_ref, impt_ref, off_ref, scale_ref, out_ref):
    # rep_ref: (TB, A, H), impt_ref: (TB, A), off_ref: (TB, 1), scale_ref: (1, A)
    rp = jnp.sum(rep_ref[...], axis=-1) * impt_ref[...] + off_ref[...]
    out_ref[...] = rp * scale_ref[...]


def _asp_reduce(rep, impt, off, scale_row, tile):
    """rep: (B, A, H), impt: (B, A), off: (B, 1), scale_row: (1, A) -> (padded_B, A)."""
    B, A, H = rep.shape
    pb = _round_up(B, tile)
    if pb != B:  # zero-pad so the grid divides evenly; padded rows reduce to 0.
        rep = jnp.pad(rep, ((0, pb - B), (0, 0), (0, 0)))
        impt = jnp.pad(impt, ((0, pb - B), (0, 0)))
        off = jnp.pad(off, ((0, pb - B), (0, 0)))
    return pl.pallas_call(
        _asp_reduce_kernel,
        out_shape=jax.ShapeDtypeStruct((pb, A), jnp.float32),
        grid=(pb // tile,),
        in_specs=[
            pl.BlockSpec((tile, A, H), lambda i: (i, 0, 0)),   # A, H kept full-extent
            pl.BlockSpec((tile, A), lambda i: (i, 0)),
            pl.BlockSpec((tile, 1), lambda i: (i, 0)),
            pl.BlockSpec((1, A), lambda i: (0, 0)),            # tiny param, pinned block
        ],
        out_specs=pl.BlockSpec((tile, A), lambda i: (i, 0)),
        compiler_params=pltpu.CompilerParams(dimension_semantics=("parallel",)),
    )(rep, impt, off, scale_row)


# ---------------------------------------------------------------------------
# Stage 2: tiled (U, I) rating matmul with fused bias/global-offset epilogue.
# ---------------------------------------------------------------------------
def _rating_matmul_kernel(su_ref, ri_ref, bg_ref, out_ref):
    # su_ref: (TU, A) user side with the Linear(A,1) weight already folded in.
    # ri_ref: (TI, A). Contract the shared aspect dim directly (no .T -> no XLU copy).
    out = lax.dot_general(
        su_ref[...], ri_ref[...],
        dimension_numbers=(((1,), (1,)), ((), ())),
        preferred_element_type=jnp.float32)
    # Single scalar epilogue add: Linear bias + globalOffset pre-summed in SMEM.
    out_ref[...] = out + bg_ref[0]


def _rating_matmul(scaled_user, rp_item, bg, tile_u, tile_i):
    PU, A = scaled_user.shape
    PI = rp_item.shape[0]
    return pl.pallas_call(
        _rating_matmul_kernel,
        out_shape=jax.ShapeDtypeStruct((PU, PI), jnp.float32),
        grid=(PU // tile_u, PI // tile_i),
        in_specs=[
            pl.BlockSpec((tile_u, A), lambda i, j: (i, 0)),
            pl.BlockSpec((tile_i, A), lambda i, j: (j, 0)),
            pl.BlockSpec(memory_space=pltpu.MemorySpace.SMEM),   # (1,) scalar, untiled
        ],
        out_specs=pl.BlockSpec((tile_u, tile_i), lambda i, j: (i, j)),
        compiler_params=pltpu.CompilerParams(
            dimension_semantics=("parallel", "parallel")),       # megacore on v7x
    )(scaled_user, rp_item, bg)


# ---------------------------------------------------------------------------
# Public wrapper mirroring ANR_RatingPred.forward (offsets pre-gathered per id).
# ---------------------------------------------------------------------------
def anr_rating_pred(user_asp_rep, item_asp_rep, user_asp_impt, item_asp_impt,
                    uid_user_offset, iid_item_offset, w_out, b_out, global_offset,
                    *, tile_u=512, tile_i=1024):
    U, A, H = user_asp_rep.shape
    I = item_asp_rep.shape[0]
    f32 = jnp.float32

    # Tile sizes: M side multiple of 8 (>= MXU tile at real sizes), N side lane-dense
    # multiple of 128; double-buffered tiles stay far below v7x's 32 MiB scoped VMEM.
    tu = min(tile_u, _round_up(U, 8))
    ti = min(tile_i, _round_up(I, 128))

    w_row = w_out.reshape(1, A).astype(f32)
    ones_row = jnp.ones((1, A), f32)

    # TODO(synk): userAspRepDropout / itemAspRepDropout are identity (eval mode).
    scaled_user = _asp_reduce(user_asp_rep.astype(f32), user_asp_impt.astype(f32),
                              uid_user_offset.astype(f32), w_row, tu)      # (pU, A)
    rp_item = _asp_reduce(item_asp_rep.astype(f32), item_asp_impt.astype(f32),
                          iid_item_offset.astype(f32), ones_row, ti)       # (pI, A)

    # Fold Linear bias + globalOffset into one scalar (single epilogue add per tile).
    bg = (b_out.reshape(-1)[:1] + global_offset.reshape(-1)[:1]).astype(f32)  # (1,)

    out = _rating_matmul(scaled_user, rp_item, bg, tu, ti)                 # (pU, pI)

    # torch returns (U, I, 1): Linear(A -> 1) keeps the trailing dim.
    return out[:U, :I, None]


if __name__ == "__main__":
    # Small, forward-consistent shapes.
    num_users, num_items, num_aspects, h1 = 8, 8, 4, 16

    key = jax.random.PRNGKey(0)
    keys = jax.random.split(key, 8)

    # Inputs (what upstream ANR modules would produce).
    user_asp_rep = jax.random.normal(keys[0], (num_users, num_aspects, h1), jnp.float32)
    item_asp_rep = jax.random.normal(keys[1], (num_items, num_aspects, h1), jnp.float32)
    user_asp_impt = jax.nn.softmax(
        jax.random.normal(keys[2], (num_users, num_aspects), jnp.float32), axis=-1)
    item_asp_impt = jax.nn.softmax(
        jax.random.normal(keys[3], (num_items, num_aspects), jnp.float32), axis=-1)

    # Parameters (deterministic init; shapes from __init__).
    uid_user_offset = 0.01 * jax.random.normal(keys[4], (num_users, 1), jnp.float32)
    iid_item_offset = 0.01 * jax.random.normal(keys[5], (num_items, 1), jnp.float32)
    w_out = jax.random.normal(keys[6], (1, num_aspects), jnp.float32) / jnp.sqrt(num_aspects)
    b_out = jnp.full((1,), 0.05, jnp.float32)
    global_offset = jnp.full((1,), 0.1, jnp.float32)

    out = anr_rating_pred(user_asp_rep, item_asp_rep, user_asp_impt, item_asp_impt,
                          uid_user_offset, iid_item_offset, w_out, b_out, global_offset)
    out = jax.block_until_ready(out)

    # Pure-JAX reference mirroring the torch forward (dropout = identity in eval).
    hi = jax.lax.Precision.HIGHEST
    rp_u = jnp.einsum('uah,ua->ua', user_asp_rep, user_asp_impt, precision=hi) + uid_user_offset
    rp_i = jnp.einsum('iah,ia->ia', item_asp_rep, item_asp_impt, precision=hi) + iid_item_offset
    rp = jnp.einsum('ua,ia->uia', rp_u, rp_i, precision=hi)
    ref = jnp.einsum('uia,a->ui', rp, w_out[0], precision=hi)[..., None] + b_out[0] + global_offset[0]

    assert out.shape == (num_users, num_items, 1), out.shape
    assert jnp.allclose(out, ref, atol=1e-4, rtol=1e-4), float(jnp.max(jnp.abs(out - ref)))
    print("KERNEL_OK")
</pallas_src>

<mosaic_0001>
module attributes {stable_mosaic.version = 11 : i64} {
  func.func @_asp_reduce_kernel(%arg0: i32, %arg1: memref<8x4x16xf32, #tpu.memory_space<vmem>>, %arg2: memref<8x4xf32, #tpu.memory_space<vmem>>, %arg3: memref<8x1xf32, #tpu.memory_space<vmem>>, %arg4: memref<1x4xf32, #tpu.memory_space<vmem>>, %arg5: memref<8x4xf32, #tpu.memory_space<vmem>>) attributes {dimension_semantics = [#tpu.dimension_semantics<parallel>], iteration_bounds = array<i64: 1>, scalar_prefetch = 0 : i64, scratch_operands = 0 : i64, tpu.core_type = #tpu.core_type<tc>, window_params = [{transform_indices = @transform_0, window_bounds = array<i64: 8, 4, 16>}, {transform_indices = @transform_1, window_bounds = array<i64: 8, 4>}, {transform_indices = @transform_2, window_bounds = array<i64: 8, 1>}, {pipeline_mode = #tpu.pipeline_mode<synchronous>, transform_indices = @transform_3, window_bounds = array<i64: 1, 4>}, {transform_indices = @transform_4, window_bounds = array<i64: 8, 4>}]} {
    %c0 = arith.constant 0 : index
    %c0_0 = arith.constant 0 : index
    %c0_1 = arith.constant 0 : index
    %0 = vector.load %arg1[%c0, %c0_0, %c0_1] : memref<8x4x16xf32, #tpu.memory_space<vmem>>, vector<8x4x16xf32>
    %cst = arith.constant dense<0.000000e+00> : vector<8x4xf32>
    %1 = vector.multi_reduction <add>, %0, %cst [2] : vector<8x4x16xf32> to vector<8x4xf32>
    %c0_2 = arith.constant 0 : index
    %c0_3 = arith.constant 0 : index
    %2 = vector.load %arg2[%c0_2, %c0_3] : memref<8x4xf32, #tpu.memory_space<vmem>>, vector<8x4xf32>
    %3 = arith.mulf %1, %2 : vector<8x4xf32>
    %c0_4 = arith.constant 0 : index
    %c0_5 = arith.constant 0 : index
    %4 = vector.load %arg3[%c0_4, %c0_5] : memref<8x1xf32, #tpu.memory_space<vmem>>, vector<8x1xf32>
    %5 = vector.broadcast %4 : vector<8x1xf32> to vector<8x4xf32>
    %6 = arith.addf %3, %5 : vector<8x4xf32>
    %c0_6 = arith.constant 0 : index
    %c0_7 = arith.constant 0 : index
    %7 = vector.load %arg4[%c0_6, %c0_7] : memref<1x4xf32, #tpu.memory_space<vmem>>, vector<1x4xf32>
    %8 = vector.broadcast %7 : vector<1x4xf32> to vector<8x4xf32>
    %9 = arith.mulf %6, %8 : vector<8x4xf32>
    %c0_8 = arith.constant 0 : index
    %c0_9 = arith.constant 0 : index
    %10 = vector.load %arg5[%c0_8, %c0_9] : memref<8x4xf32, #tpu.memory_space<vmem>>, vector<8x4xf32>
    tpu.vector_store %arg5[%c0_8, %c0_9], %9 {strides = array<i32>} : memref<8x4xf32, #tpu.memory_space<vmem>>, vector<8x4xf32>,
    return
  }
  func.func @transform_0(%arg0: i32) -> (i32, i32, i32) {
    %c0_i32 = arith.constant 0 : i32
    %c0_i32_0 = arith.constant 0 : i32
    %c0_i32_1 = arith.constant 0 : i32
    return %arg0, %c0_i32, %c0_i32_0 : i32, i32, i32
  }
  func.func @transform_1(%arg0: i32) -> (i32, i32) {
    %c0_i32 = arith.constant 0 : i32
    %c0_i32_0 = arith.constant 0 : i32
    return %arg0, %c0_i32 : i32, i32
  }
  func.func @transform_2(%arg0: i32) -> (i32, i32) {
    %c0_i32 = arith.constant 0 : i32
    %c0_i32_0 = arith.constant 0 : i32
    return %arg0, %c0_i32 : i32, i32
  }
  func.func @transform_3(%arg0: i32) -> (i32, i32) {
    %c0_i32 = arith.constant 0 : i32
    %c0_i32_0 = arith.constant 0 : i32
    %c0_i32_1 = arith.constant 0 : i32
    return %c0_i32, %c0_i32_0 : i32, i32
  }
  func.func @transform_4(%arg0: i32) -> (i32, i32) {
    %c0_i32 = arith.constant 0 : i32
    %c0_i32_0 = arith.constant 0 : i32
    return %arg0, %c0_i32 : i32, i32
  }
}

</mosaic_0001>

<llo_original>
// kernel: tpu_custom_call.1
$region0: #{tpu_custom_call.1}
  #allocation0 [shape = 'u32[]', space=smem, size = 0x4, offset = 0x4, fixed_abs, tag = 'smem constant byte address 0x4 - core index']
  #allocation1 [shape = 'u32[72,128]{1,0:T(1,128)}', space=vmem, size = 0x9000, scoped, tag = 'internal scratch']
  %s0 = inlined_call_operand.hbm [shape: f32[8,4,16], index: 0, kind: input, shape index: {}]
  %s1 = inlined_call_operand.vmem [shape: f32[8,4], index: 1, kind: input, shape index: {}]
  %s2 = inlined_call_operand.vmem [shape: f32[8,1], index: 2, kind: input, shape index: {}]
  %s3 = inlined_call_operand.vmem [shape: f32[1,4], index: 3, kind: input, shape index: {}]
  %s4 = inlined_call_operand.vmem [shape: f32[8,4], index: 4, kind: output, shape index: {}]
  %s5 = sld [smem:[#allocation0]]
  $region30: #{tpu_custom_call.1} parent=0
    _
  %s7 = ssub.s32 1, %s5
  %s8 = scalar_select 0, %s7, %s5
  $region1: #{tpu_custom_call.1} parent=0
    #allocation2 [shape = 'u8[16384]{0}', space=vmem, size = 0x4000, scoped, tag = 'input window, operand 0, single buffered']
    #allocation3 [shape = 's32[1]{0}', space=sflag, size = 0x4, scoped, tag = 'scoped memory for tpu_custom_call.1']
    %9 = vsyncpa [#allocation3], 0
    // Predicated region
    $region2: #{tpu_custom_call.1} parent=1 // pred_check
      _
    $region3: #{tpu_custom_call.1} parent=1 // pred_check_branch
      %11 = sbr.rel (0) target = $region5
    $region4: #{tpu_custom_call.1} parent=1 // pred_region
      %13 = vsyncadd [#allocation3], 0
      %s14 = sshll.u32 %s0, 4
      %s15 = int_to_ptr.hbm [resolvable:$true] %s14
      %s16 = sshll.u32 [#allocation2], 4
      %s17 = int_to_ptr.vmem [resolvable:$true] %s16
      %22 = dma.hbm_to_vmem [thread:$0]  %s15, 512, %s17, [#allocation3], 64, 64, 4
    $region5: #{tpu_custom_call.1} parent=1 // pred_fallthru
      _
    // Predicated region
    $region6: #{tpu_custom_call.1} parent=1 // pred_check
      _
    $region7: #{tpu_custom_call.1} parent=1 // pred_check_branch
      %24 = sbr.rel (0) target = $region9
    $region8: #{tpu_custom_call.1} parent=1 // pred_region
      _
    $region9: #{tpu_custom_call.1} parent=1 // pred_fallthru
      _
    // Predicated region
    $region10: #{tpu_custom_call.1} parent=1 // pred_check
      _
    $region11: #{tpu_custom_call.1} parent=1 // pred_check_branch
      %26 = sbr.rel (0) target = $region13
    $region12: #{tpu_custom_call.1} parent=1 // pred_region
      _
    $region13: #{tpu_custom_call.1} parent=1 // pred_fallthru
      _
    // Predicated region
    $region14: #{tpu_custom_call.1} parent=1 // pred_check
      _
    $region15: #{tpu_custom_call.1} parent=1 // pred_check_branch
      %28 = sbr.rel (0) target = $region17
    $region16: #{tpu_custom_call.1} parent=1 // pred_region
      _
    $region17: #{tpu_custom_call.1} parent=1 // pred_fallthru
      _
    // Predicated region
    $region18: #{tpu_custom_call.1} parent=1 // pred_check
      _
    $region19: #{tpu_custom_call.1} parent=1 // pred_check_branch
      %30 = sbr.rel (0) target = $region21
    $region20: #{tpu_custom_call.1} parent=1 // pred_region
      %32 = dma.done [#allocation3], 512
    $region21: #{tpu_custom_call.1} parent=1 // pred_fallthru
      _
    %v33 = vld [vmem:[#allocation2] sm:$0xf]
    %v34 = vld [vmem:[#allocation2 + $0x4] sm:$0xf]
    %v35 = vld [vmem:[#allocation2 + $0x8] sm:$0xf]
    %v36 = vld [vmem:[#allocation2 + $0xc] sm:$0xf]
    %v37 = vld [vmem:[#allocation2 + $0x10] sm:$0xf]
    %v38 = vld [vmem:[#allocation2 + $0x14] sm:$0xf]
    %v39 = vld [vmem:[#allocation2 + $0x18] sm:$0xf]
    %v40 = vld [vmem:[#allocation2 + $0x1c] sm:$0xf]
    %vm41 = vcmask 125952
    %v42 = vsel %vm41, %v33, 0.0
    %43 = vadd.xlane.f32.xlu0 %v42
    %v44 = vpop.xlane.xlu0 %43
    %v45 = vsel %vm41, %v34, 0.0
    %46 = vadd.xlane.f32.xlu0 %v45
    %v47 = vpop.xlane.xlu0 %46
    %v48 = vsel %vm41, %v35, 0.0
    %49 = vadd.xlane.f32.xlu0 %v48
    %v50 = vpop.xlane.xlu0 %49
    %v51 = vsel %vm41, %v36, 0.0
    %52 = vadd.xlane.f32.xlu0 %v51
    %v53 = vpop.xlane.xlu0 %52
    %v54 = vsel %vm41, %v37, 0.0
    %55 = vadd.xlane.f32.xlu0 %v54
    %v56 = vpop.xlane.xlu0 %55
    %v57 = vsel %vm41, %v38, 0.0
    %58 = vadd.xlane.f32.xlu0 %v57
    %v59 = vpop.xlane.xlu0 %58
    %v60 = vsel %vm41, %v39, 0.0
    %61 = vadd.xlane.f32.xlu0 %v60
    %v62 = vpop.xlane.xlu0 %61
    %v63 = vsel %vm41, %v40, 0.0
    %64 = vadd.xlane.f32.xlu0 %v63
    %v65 = vpop.xlane.xlu0 %64
    %v66 = vld [vmem:[%s1] sm:$0xff]
    %v68 = vperm.slane %v66, 0
    %v69 = vlaneseq
    %v70 = vshrl.u32 %v69, 7
    %72 = vset.pattern.permute.xlu0 %v70
    %73 = vperm.xlu0 %72, %v68
    %v74 = vpop.permute.xlu0 %73
    %v75 = vperm.slane %v66, 1
    %v76 = vlaneseq
    %v77 = vshrl.u32 %v76, 7
    %79 = vset.pattern.permute.xlu0 %v77
    %80 = vperm.xlu0 %79, %v75
    %v81 = vpop.permute.xlu0 %80
    %v82 = vperm.slane %v66, 2
    %v83 = vlaneseq
    %v84 = vshrl.u32 %v83, 7
    %86 = vset.pattern.permute.xlu0 %v84
    %87 = vperm.xlu0 %86, %v82
    %v88 = vpop.permute.xlu0 %87
    %v89 = vperm.slane %v66, 3
    %v90 = vlaneseq
    %v91 = vshrl.u32 %v90, 7
    %93 = vset.pattern.permute.xlu0 %v91
    %94 = vperm.xlu0 %93, %v89
    %v95 = vpop.permute.xlu0 %94
    %v96 = vperm.slane %v66, 4
    %v97 = vlaneseq
    %v98 = vshrl.u32 %v97, 7
    %100 = vset.pattern.permute.xlu0 %v98
    %101 = vperm.xlu0 %100, %v96
    %v102 = vpop.permute.xlu0 %101
    %v103 = vperm.slane %v66, 5
    %v104 = vlaneseq
    %v105 = vshrl.u32 %v104, 7
    %107 = vset.pattern.permute.xlu0 %v105
    %108 = vperm.xlu0 %107, %v103
    %v109 = vpop.permute.xlu0 %108
    %v110 = vperm.slane %v66, 6
    %v111 = vlaneseq
    %v112 = vshrl.u32 %v111, 7
    %114 = vset.pattern.permute.xlu0 %v112
    %115 = vperm.xlu0 %114, %v110
    %v116 = vpop.permute.xlu0 %115
    %v117 = vperm.slane %v66, 7
    %v118 = vlaneseq
    %v119 = vshrl.u32 %v118, 7
    %121 = vset.pattern.permute.xlu0 %v119
    %122 = vperm.xlu0 %121, %v117
    %v123 = vpop.permute.xlu0 %122
    %v132 = vmul.f32 %v44, %v74
    %v133 = vmul.f32 %v47, %v81
    %v134 = vmul.f32 %v50, %v88
    %v135 = vmul.f32 %v53, %v95
    %v136 = vmul.f32 %v56, %v102
    %v137 = vmul.f32 %v59, %v109
    %v138 = vmul.f32 %v62, %v116
    %v139 = vmul.f32 %v65, %v123
    %v140 = vld [vmem:[%s2] sm:$0xff]
    %142 = vset.pattern.permute.xlu0 0
    %143 = vperm.xlu0 %142, %v140
    %v144 = vpop.permute.xlu0 %143
    %v145 = vperm.slane %v144, 0
    %v146 = vperm.slane %v144, 1
    %v147 = vperm.slane %v144, 2
    %v148 = vperm.slane %v144, 3
    %v149 = vperm.slane %v144, 4
    %v150 = vperm.slane %v144, 5
    %v151 = vperm.slane %v144, 6
    %v152 = vperm.slane %v144, 7
    %v161 = vadd.f32 %v132, %v145
    %v162 = vadd.f32 %v133, %v146
    %v163 = vadd.f32 %v134, %v147
    %v164 = vadd.f32 %v135, %v148
    %v165 = vadd.f32 %v136, %v149
    %v166 = vadd.f32 %v137, %v150
    %v167 = vadd.f32 %v138, %v151
    %v168 = vadd.f32 %v139, %v152
    %v169 = vld [vmem:[%s3] sm:$0x1]
    %v171 = vperm.slane %v169, 0
    %v172 = vlaneseq
    %v173 = vshrl.u32 %v172, 7
    %175 = vset.pattern.permute.xlu0 %v173
    %176 = vperm.xlu0 %175, %v171
    %v177 = vpop.permute.xlu0 %176
    %v179 = vmul.f32 %v161, %v177
    %v180 = vmul.f32 %v162, %v177
    %v181 = vmul.f32 %v163, %v177
    %v182 = vmul.f32 %v164, %v177
    %v183 = vmul.f32 %v165, %v177
    %v184 = vmul.f32 %v166, %v177
    %v185 = vmul.f32 %v167, %v177
    %v186 = vmul.f32 %v168, %v177
    %195 = vset.pattern.permute.xlu0 0
    %196 = vperm.xlu0 %195, %v179
    %v197 = vpop.permute.xlu0 %196
    %198 = vset.pattern.permute.xlu0 0
    %199 = vperm.xlu0 %198, %v180
    %v200 = vpop.permute.xlu0 %199
    %201 = vset.pattern.permute.xlu0 0
    %202 = vperm.xlu0 %201, %v181
    %v203 = vpop.permute.xlu0 %202
    %204 = vset.pattern.permute.xlu0 0
    %205 = vperm.xlu0 %204, %v182
    %v206 = vpop.permute.xlu0 %205
    %207 = vset.pattern.permute.xlu0 0
    %208 = vperm.xlu0 %207, %v183
    %v209 = vpop.permute.xlu0 %208
    %210 = vset.pattern.permute.xlu0 0
    %211 = vperm.xlu0 %210, %v184
    %v212 = vpop.permute.xlu0 %211
    %213 = vset.pattern.permute.xlu0 0
    %214 = vperm.xlu0 %213, %v185
    %v215 = vpop.permute.xlu0 %214
    %216 = vset.pattern.permute.xlu0 0
    %217 = vperm.xlu0 %216, %v186
    %v218 = vpop.permute.xlu0 %217
    %v219 = vlaneseq
    %v220 = vand.u32 %v219, 127
    %v221 = vperm.slane %v197, %v220
    %v222 = vperm.slane %v200, %v220
    %v223 = vperm.slane %v203, %v220
    %v224 = vperm.slane %v206, %v220
    %v225 = vperm.slane %v209, %v220
    %v226 = vperm.slane %v212, %v220
    %v227 = vperm.slane %v215, %v220
    %v228 = vperm.slane %v218, %v220
    %vm229 = vcmask 1041409
    %v230 = vsel %vm229, %v222, %v221
    %vm231 = vcmask 1042434
    %v232 = vsel %vm231, %v223, %v230
    %vm233 = vcmask 1043459
    %v234 = vsel %vm233, %v224, %v232
    %vm235 = vcmask 1044484
    %v236 = vsel %vm235, %v225, %v234
    %vm237 = vcmask 1045509
    %v238 = vsel %vm237, %v226, %v236
    %vm239 = vcmask 1046534
    %v240 = vsel %vm239, %v227, %v238
    %vm241 = vcmask 1047559
    %v242 = vsel %vm241, %v228, %v240
    %vm244 = vcmask 31744
    %245 = vst.msk [vmem:[%s4] sm:$0xff] %vm244, %v242
    // Predicated region
    $region22: #{tpu_custom_call.1} parent=1 // pred_check
      _
    $region23: #{tpu_custom_call.1} parent=1 // pred_check_branch
      %247 = sbr.rel (0) target = $region25
    $region24: #{tpu_custom_call.1} parent=1 // pred_region
      _
    $region25: #{tpu_custom_call.1} parent=1 // pred_fallthru
      _
    // Predicated region
    $region26: #{tpu_custom_call.1} parent=1 // pred_check
      _
    $region27: #{tpu_custom_call.1} parent=1 // pred_check_branch
      %249 = sbr.rel (0) target = $region29
    $region28: #{tpu_custom_call.1} parent=1 // pred_region
      _
    $region29: #{tpu_custom_call.1} parent=1 // pred_fallthru
      _
    %250 = vsyncpa [#allocation3], 1

</llo_original>
